<compile_context>
chip_gen: v7x
topology: tpu7x:2x2x1
jax: 0.10.0
libtpu: 0.0.40
codegen_flags: <defaults>
</compile_context>

<pallas_src>
import jax
import jax.numpy as jnp
from jax.experimental import pallas as pl
from jax.experimental.pallas import tpu as pltpu

# ---- static quantizer config (UniformAffineQuantizer defaults: n_bits=8) ----
N_BITS_W = 8
N_BITS_A = 8
N_LEVELS_W = 2 ** N_BITS_W
N_LEVELS_A = 2 ** N_BITS_A
EPS = 1e-8

# ---- conv config (the nn.Conv2d org_module) ----
IC, OC, KH, KW = 4, 8, 3, 3
STRIDE, PAD = 1, 1

LANE = 128   # TPU lane width; pad K and OC to multiples of this
TM = 256     # tile over the N*OH*OW axis (per grid step)


def _fake_quant(x, delta, zp, n_levels):
    x_int = jnp.round(x / delta) + zp
    x_q = jnp.clip(x_int, 0.0, float(n_levels - 1))
    return (x_q - zp) * delta


def _round_up(x, m):
    return (x + m - 1) // m * m


def quant_conv_kernel(qp_ref, p_ref, w_ref, b_ref, out_ref):
    """Fused im2col-matmul + bias + activation fake-quant.

    qp_ref  (SMEM, f32[2])        [delta_a, zp_a]          (act quantizer)
    p_ref   (VMEM, (TM, K_pad))   im2col patches tile (zero padded on K)
    w_ref   (VMEM, (K_pad, OC_pad)) weight, already fake-quantized + (K, OC)
    b_ref   (VMEM, (1, OC_pad))   bias (zero padded)
    out_ref (VMEM, (TM, OC_pad))
    """
    delta_a = qp_ref[0]
    zp_a = qp_ref[1]

    # conv as matmul on im2col patches (MXU); weight already (K, OC) so no
    # in-kernel transpose, and already fake-quantized (grid-invariant, hoisted).
    acc = jnp.dot(p_ref[...], w_ref[...], preferred_element_type=jnp.float32)
    acc = acc + b_ref[...]

    # activation fake-quantization (act_quantizer)
    out_ref[...] = _fake_quant(acc, delta_a, zp_a, N_LEVELS_A)


def calculate_qparams(x, n_levels):
    """UniformAffineQuantizer.calculate_qparams (tensor-wise minmax)."""
    min_val = jnp.min(x)
    max_val = jnp.max(x)
    quant_max = float(n_levels - 1)
    min_val_neg = jnp.minimum(min_val, 0.0)
    max_val_pos = jnp.maximum(max_val, 0.0)
    scale = (max_val_pos - min_val_neg) / quant_max
    scale = jnp.maximum(scale, EPS)
    zero_point = -jnp.round(min_val_neg / scale)
    zero_point = jnp.clip(zero_point, 0.0, quant_max)
    return scale, zero_point


def im2col_nchw(x, kh, kw, stride, pad):
    # TODO(synk): for large conv sizes (esp. v5e HBM-bound) move to an
    # implicit-GEMM layout (DMA strided input rows directly) instead of
    # materializing the KH*KW-expanded patches array in HBM.
    n, c, h, w = x.shape
    xp = jnp.pad(x, ((0, 0), (0, 0), (pad, pad), (pad, pad)))
    oh = (h + 2 * pad - kh) // stride + 1
    ow = (w + 2 * pad - kw) // stride + 1
    pieces = []
    for i in range(kh):
        for j in range(kw):
            pieces.append(
                xp[:, :, i : i + oh * stride : stride, j : j + ow * stride : stride]
            )
    p = jnp.stack(pieces, axis=0)            # (KH*KW, N, C, OH, OW)
    p = p.transpose(1, 3, 4, 2, 0)           # (N, OH, OW, C, KH*KW)
    p = p.reshape(n * oh * ow, c * kh * kw)  # flatten order matches (C, KH, KW)
    return p, oh, ow


def quant_module_forward(x, weight, bias, qparams):
    """QuantModule.forward (Conv2d), weight+act quant enabled. x: NCHW f32."""
    n = x.shape[0]
    dw, zpw, da, zpa = qparams[0], qparams[1], qparams[2], qparams[3]

    # Weight fake-quantization hoisted out of the grid loop (grid-invariant),
    # pre-transposed to (K, OC) so the kernel does no per-step requant/transpose.
    w_dq = _fake_quant(weight, dw, zpw, N_LEVELS_W)        # (OC, IC, KH, KW)
    w_kn = w_dq.reshape(OC, IC * KH * KW).T                # (K, OC)

    patches, oh, ow = im2col_nchw(x, KH, KW, STRIDE, PAD)  # (M, K)
    m, k = patches.shape

    # lane/sublane-dense padding: K -> 128, OC -> 128, M -> multiple of TM.
    k_pad = _round_up(max(k, LANE), LANE)
    oc_pad = _round_up(max(OC, LANE), LANE)
    tm = min(TM, _round_up(m, 8))
    m_pad = _round_up(m, tm)

    patches_p = jnp.pad(patches, ((0, m_pad - m), (0, k_pad - k)))
    w_p = jnp.pad(w_kn, ((0, k_pad - k), (0, oc_pad - OC)))
    b_p = jnp.pad(bias.reshape(1, OC), ((0, 0), (0, oc_pad - OC)))
    act_qp = jnp.stack([da, zpa]).astype(jnp.float32)

    # TODO(synk): bf16 MXU operands (v6e/v7x) not enabled; requires validating
    # the act-quant rounding boundary against the f32 reference.
    out_flat = pl.pallas_call(
        quant_conv_kernel,
        out_shape=jax.ShapeDtypeStruct((m_pad, oc_pad), jnp.float32),
        grid_spec=pltpu.PrefetchScalarGridSpec(
            num_scalar_prefetch=0,
            grid=(m_pad // tm,),
            in_specs=[
                pl.BlockSpec(memory_space=pltpu.MemorySpace.SMEM),   # act qparams
                pl.BlockSpec((tm, k_pad), lambda i: (i, 0)),         # patches
                pl.BlockSpec((k_pad, oc_pad), lambda i: (0, 0)),     # weight (resident)
                pl.BlockSpec((1, oc_pad), lambda i: (0, 0)),         # bias (resident)
            ],
            out_specs=pl.BlockSpec((tm, oc_pad), lambda i: (i, 0)),
        ),
        compiler_params=pltpu.CompilerParams(
            dimension_semantics=("parallel",),
            vmem_limit_bytes=32 * 1024 * 1024,  # well within v7x's 64 MiB physical
        ),
    )(act_qp, patches_p, w_p, b_p)

    out = out_flat[:m, :OC].reshape(n, oh, ow, OC).transpose(0, 3, 1, 2)  # NCHW
    return out


def reference_forward(x, weight, bias, qparams):
    dw, zpw, da, zpa = qparams[0], qparams[1], qparams[2], qparams[3]
    w_dq = _fake_quant(weight, dw, zpw, N_LEVELS_W)
    out = jax.lax.conv_general_dilated(
        x, w_dq, window_strides=(STRIDE, STRIDE),
        padding=((PAD, PAD), (PAD, PAD)),
        dimension_numbers=("NCHW", "OIHW", "NCHW"),
    )
    out = out + bias.reshape(1, OC, 1, 1)
    return _fake_quant(out, da, zpa, N_LEVELS_A)


if __name__ == "__main__":
    key = jax.random.PRNGKey(0)
    kx, kw, kb = jax.random.split(key, 3)

    # deterministic synthetic parameters (nn.Conv2d(IC, OC, 3, padding=1) shapes)
    x = jax.random.normal(kx, (2, IC, 16, 16), dtype=jnp.float32)
    weight = jax.random.normal(kw, (OC, IC, KH, KW), dtype=jnp.float32) * 0.1
    bias = jax.random.normal(kb, (OC,), dtype=jnp.float32) * 0.05

    # "calibrated" quant params (glue / parameter setup, minmax calculate_qparams)
    # TODO(synk): MSE grid-search calibration (perform_1D/2D_search) not ported;
    # it only runs when inited=False and is host-side setup, not the fwd hot path.
    dw, zpw = calculate_qparams(weight, N_LEVELS_W)
    out_fp = jax.lax.conv_general_dilated(
        x, weight, (STRIDE, STRIDE), ((PAD, PAD), (PAD, PAD)),
        dimension_numbers=("NCHW", "OIHW", "NCHW"),
    ) + bias.reshape(1, OC, 1, 1)
    da, zpa = calculate_qparams(out_fp, N_LEVELS_A)
    qparams = jnp.stack([dw, zpw, da, zpa]).astype(jnp.float32)

    out = quant_module_forward(x, weight, bias, qparams)
    out = jax.block_until_ready(out)

    ref = reference_forward(x, weight, bias, qparams)
    assert out.shape == (2, OC, 16, 16)
    assert jnp.allclose(out, ref, atol=1e-4, rtol=1e-4), float(jnp.max(jnp.abs(out - ref)))
    print("KERNEL_OK")
</pallas_src>

<mosaic_0001>
module attributes {stable_mosaic.version = 11 : i64} {
  func.func @quant_conv_kernel(%arg0: i32, %arg1: memref<2xf32, #tpu.memory_space<smem>>, %arg2: memref<256x128xf32, #tpu.memory_space<vmem>>, %arg3: memref<128x128xf32, #tpu.memory_space<vmem>>, %arg4: memref<1x128xf32, #tpu.memory_space<vmem>>, %arg5: memref<256x128xf32, #tpu.memory_space<vmem>>) attributes {dimension_semantics = [#tpu.dimension_semantics<parallel>], iteration_bounds = array<i64: 2>, scalar_prefetch = 0 : i64, scratch_operands = 0 : i64, tpu.core_type = #tpu.core_type<tc>, window_params = [{transform_indices = @transform_0, window_bounds = array<i64: 2>}, {transform_indices = @transform_1, window_bounds = array<i64: 256, 128>}, {pipeline_mode = #tpu.pipeline_mode<synchronous>, transform_indices = @transform_2, window_bounds = array<i64: 128, 128>}, {pipeline_mode = #tpu.pipeline_mode<synchronous>, transform_indices = @transform_3, window_bounds = array<i64: 1, 128>}, {transform_indices = @transform_4, window_bounds = array<i64: 256, 128>}]} {
    %c0 = arith.constant 0 : index
    %0 = memref.load %arg1[%c0] : memref<2xf32, #tpu.memory_space<smem>>
    %c1 = arith.constant 1 : index
    %1 = memref.load %arg1[%c1] : memref<2xf32, #tpu.memory_space<smem>>
    %c0_0 = arith.constant 0 : index
    %c0_1 = arith.constant 0 : index
    %2 = vector.load %arg2[%c0_0, %c0_1] : memref<256x128xf32, #tpu.memory_space<vmem>>, vector<256x128xf32>
    %c0_2 = arith.constant 0 : index
    %c0_3 = arith.constant 0 : index
    %3 = vector.load %arg3[%c0_2, %c0_3] : memref<128x128xf32, #tpu.memory_space<vmem>>, vector<128x128xf32>
    %cst = arith.constant dense<0.000000e+00> : vector<256x128xf32>
    %4 = tpu.matmul %2, %3, %cst {dimension_numbers = #tpu.dot_dimension_numbers<[1], [0], [0], [1], [0, 0, 1, 1], [], []>} : vector<256x128xf32>, vector<128x128xf32>, vector<256x128xf32> -> vector<256x128xf32>
    %c0_4 = arith.constant 0 : index
    %c0_5 = arith.constant 0 : index
    %5 = vector.load %arg4[%c0_4, %c0_5] : memref<1x128xf32, #tpu.memory_space<vmem>>, vector<1x128xf32>
    %6 = vector.broadcast %5 : vector<1x128xf32> to vector<256x128xf32>
    %7 = arith.addf %4, %6 : vector<256x128xf32>
    %8 = vector.broadcast %0 : f32 to vector<256x128xf32>
    %9 = arith.divf %7, %8 : vector<256x128xf32>
    %10 = math.roundeven %9 : vector<256x128xf32>
    %11 = vector.broadcast %1 : f32 to vector<256x128xf32>
    %12 = arith.addf %10, %11 : vector<256x128xf32>
    %cst_6 = arith.constant 0.000000e+00 : f32
    %cst_7 = arith.constant 2.550000e+02 : f32
    %13 = vector.broadcast %cst_6 : f32 to vector<256x128xf32>
    %14 = arith.maximumf %13, %12 : vector<256x128xf32>
    %15 = vector.broadcast %cst_7 : f32 to vector<256x128xf32>
    %16 = arith.minimumf %15, %14 : vector<256x128xf32>
    %17 = vector.broadcast %1 : f32 to vector<256x128xf32>
    %18 = arith.subf %16, %17 : vector<256x128xf32>
    %19 = vector.broadcast %0 : f32 to vector<256x128xf32>
    %20 = arith.mulf %18, %19 : vector<256x128xf32>
    %c0_8 = arith.constant 0 : index
    %c0_9 = arith.constant 0 : index
    %21 = vector.load %arg5[%c0_8, %c0_9] : memref<256x128xf32, #tpu.memory_space<vmem>>, vector<256x128xf32>
    tpu.vector_store %arg5[%c0_8, %c0_9], %20 {strides = array<i32>} : memref<256x128xf32, #tpu.memory_space<vmem>>, vector<256x128xf32>,
    return
  }
  func.func @transform_0(%arg0: i32) -> i32 {
    %c0_i32 = arith.constant 0 : i32
    %c0_i32_0 = arith.constant 0 : i32
    return %c0_i32 : i32
  }
  func.func @transform_1(%arg0: i32) -> (i32, i32) {
    %c0_i32 = arith.constant 0 : i32
    %c0_i32_0 = arith.constant 0 : i32
    return %arg0, %c0_i32 : i32, i32
  }
  func.func @transform_2(%arg0: i32) -> (i32, i32) {
    %c0_i32 = arith.constant 0 : i32
    %c0_i32_0 = arith.constant 0 : i32
    %c0_i32_1 = arith.constant 0 : i32
    return %c0_i32, %c0_i32_0 : i32, i32
  }
  func.func @transform_3(%arg0: i32) -> (i32, i32) {
    %c0_i32 = arith.constant 0 : i32
    %c0_i32_0 = arith.constant 0 : i32
    %c0_i32_1 = arith.constant 0 : i32
    return %c0_i32, %c0_i32_0 : i32, i32
  }
  func.func @transform_4(%arg0: i32) -> (i32, i32) {
    %c0_i32 = arith.constant 0 : i32
    %c0_i32_0 = arith.constant 0 : i32
    return %arg0, %c0_i32 : i32, i32
  }
}

</mosaic_0001>

<llo_original>
// kernel: tpu_custom_call.1
$region0: #{tpu_custom_call.1}
  #allocation0 [shape = 'u32[]', space=smem, size = 0x4, offset = 0x4, fixed_abs, tag = 'smem constant byte address 0x4 - core index']
  #allocation1 [shape = 'u32[144,128]{1,0:T(1,128)}', space=vmem, size = 0x12000, scoped, tag = 'internal scratch']
  %s0 = inlined_call_operand.hbm [shape: f32[2], index: 0, kind: input, shape index: {}]
  %s1 = inlined_call_operand.hbm [shape: f32[512,128], index: 1, kind: input, shape index: {}]
  %s2 = inlined_call_operand.hbm [shape: f32[128,128], index: 2, kind: input, shape index: {}]
  %s3 = inlined_call_operand.vmem [shape: f32[1,128], index: 3, kind: input, shape index: {}]
  %s4 = inlined_call_operand.hbm [shape: f32[512,128], index: 4, kind: output, shape index: {}]
  %s5 = sld [smem:[#allocation0]]
  $region61: #{tpu_custom_call.1} parent=0
    _
  %s7 = ssub.s32 1, %s5
  %s8 = scalar_select 0, %s7, %s5
  $region1: #{tpu_custom_call.1} parent=0
    #allocation2 [shape = 'u8[512]{0}', space=smem, size = 0x200, scoped, tag = 'input window, operand 0, single buffered']
    #allocation3 [shape = 's32[2]{0}', space=sflag, size = 0x8, scoped, tag = 'scoped memory for tpu_custom_call.1']
    #allocation4 [shape = 's32[2]{0}', space=sflag, size = 0x8, scoped, tag = 'scoped memory for tpu_custom_call.1']
    #allocation5 [shape = 's32[2]{0}', space=sflag, size = 0x8, scoped, tag = 'scoped memory for tpu_custom_call.1']
    #allocation6 [shape = 'u8[262144]{0}', space=vmem, size = 0x40000, scoped, tag = 'input window, operand 1']
    #allocation7 [shape = 'u8[65536]{0}', space=vmem, size = 0x10000, scoped, tag = 'input window, operand 2, single buffered']
    #allocation8 [shape = 's32[1]{0}', space=sflag, size = 0x4, scoped, tag = 'scoped memory for tpu_custom_call.1']
    #allocation9 [shape = 'u8[262144]{0}', space=vmem, size = 0x40000, scoped, tag = 'output window, operand 0']
    %9 = vsyncpa [#allocation5], 0
    %10 = vsyncpa [#allocation3], 0
    %s11 = scalar_lea.sflag [#allocation3], 1
    %12 = vsyncpa %s11, 0
    %13 = vsyncpa [#allocation8], 0
    %14 = vsyncpa [#allocation4], 0
    %s15 = scalar_lea.sflag [#allocation4], 1
    %16 = vsyncpa %s15, 0
    loop: start=0, step=1, limit=4
    $region2: #{tpu_custom_call.1} parent=1 // loop_pre_header
      _
    $region3: #{tpu_custom_call.1} parent=1 // loop_header
      %s18 = sphi 0, %s22
      %p19 = scmp.ge.s32.totalorder %s18, 4
      %s26 = sphi 0, %s26
      %s28 = sphi 0, %s26
      %s29 = sphi 0, %s28
      %s43 = sphi 0, %s29
      %s49 = sphi 0, %s51
      %s52 = sphi 0, %s49
      %s53 = sphi 0, %s52
      %s69 = sphi 0, %s53
      %s73 = sphi 0, %s73
      %s75 = sphi 0, %s73
      %s76 = sphi 0, %s75
      %s90 = sphi 0, %s76
      %s94 = sphi 0, %s94
      %s96 = sphi 0, %s94
      %s97 = sphi 0, %s96
      %s111 = sphi 0, %s97
      %s117 = sphi 0, %s119
      %s120 = sphi 0, %s117
      %s121 = sphi 0, %s120
      %s137 = sphi 0, %s121
    $region4: #{tpu_custom_call.1} parent=1 // loop_header_branch
      %21 = sbr.rel (%p19) target = $region8
    $region5: #{tpu_custom_call.1} parent=1 // loop_body
      %s23 = ssub.s32 %s18, 1
      %s24 = ssub.s32 %s18, 2
      %s25 = sadd.s32 %s18, 1
      %s27 = sadd.s32 %s26, 1
      %p30 = scmp.eq.s32.totalorder %s18, 1
      %p31 = scmp.ne.s32.totalorder %s26, %s28
      %p32 = scmp.eq.s32.totalorder %s18, 0
      %p33 = por %p31, %p32
      %p34 = scmp.ne.s32.totalorder %s26, %s28
      %p35 = scmp.eq.s32.totalorder %s23, 1
      %p36 = por %p34, %p35
      %p37 = scmp.ne.s32.totalorder %s28, %s29
      %p38 = scmp.eq.s32.totalorder %s23, 0
      %p39 = por %p37, %p38
      %p40 = scmp.ne.s32.totalorder %s28, %s29
      %p41 = scmp.eq.s32.totalorder %s24, 1
      %p42 = por %p40, %p41
      %p44 = scmp.ne.s32.totalorder %s29, %s43
      %p45 = scmp.eq.s32.totalorder %s24, 0
      %p46 = por %p44, %p45
      %s47 = ssub.s32 %s18, %s25
      %p48 = scmp.eq.s32.totalorder %s47, 0
      %s50 = sadd.s32 %s49, 1
      %s51 = scalar_select %p48, %s49, %s50
      %p54 = pneg %p48
      %p55 = scmp.eq.s32.totalorder %s18, 1
      %p56 = por %p54, %p55
      %p57 = scmp.ne.s32.totalorder %s49, %s52
      %p58 = scmp.eq.s32.totalorder %s18, 0
      %p59 = por %p57, %p58
      %p60 = scmp.ne.s32.totalorder %s49, %s52
      %p61 = scmp.eq.s32.totalorder %s23, 1
      %p62 = por %p60, %p61
      %p63 = scmp.ne.s32.totalorder %s52, %s53
      %p64 = scmp.eq.s32.totalorder %s23, 0
      %p65 = por %p63, %p64
      %p66 = scmp.ne.s32.totalorder %s52, %s53
      %p67 = scmp.eq.s32.totalorder %s24, 1
      %p68 = por %p66, %p67
      %p70 = scmp.ne.s32.totalorder %s53, %s69
      %p71 = scmp.eq.s32.totalorder %s24, 0
      %p72 = por %p70, %p71
      %s74 = sadd.s32 %s73, 1
      %p77 = scmp.eq.s32.totalorder %s18, 1
      %p78 = scmp.ne.s32.totalorder %s73, %s75
      %p79 = scmp.eq.s32.totalorder %s18, 0
      %p80 = por %p78, %p79
      %p81 = scmp.ne.s32.totalorder %s73, %s75
      %p82 = scmp.eq.s32.totalorder %s23, 1
      %p83 = por %p81, %p82
      %p84 = scmp.ne.s32.totalorder %s75, %s76
      %p85 = scmp.eq.s32.totalorder %s23, 0
      %p86 = por %p84, %p85
      %p87 = scmp.ne.s32.totalorder %s75, %s76
      %p88 = scmp.eq.s32.totalorder %s24, 1
      %p89 = por %p87, %p88
      %p91 = scmp.ne.s32.totalorder %s76, %s90
      %p92 = scmp.eq.s32.totalorder %s24, 0
      %p93 = por %p91, %p92
      %s95 = sadd.s32 %s94, 1
      %p98 = scmp.eq.s32.totalorder %s18, 1
      %p99 = scmp.ne.s32.totalorder %s94, %s96
      %p100 = scmp.eq.s32.totalorder %s18, 0
      %p101 = por %p99, %p100
      %p102 = scmp.ne.s32.totalorder %s94, %s96
      %p103 = scmp.eq.s32.totalorder %s23, 1
      %p104 = por %p102, %p103
      %p105 = scmp.ne.s32.totalorder %s96, %s97
      %p106 = scmp.eq.s32.totalorder %s23, 0
      %p107 = por %p105, %p106
      %p108 = scmp.ne.s32.totalorder %s96, %s97
      %p109 = scmp.eq.s32.totalorder %s24, 1
      %p110 = por %p108, %p109
      %p112 = scmp.ne.s32.totalorder %s97, %s111
      %p113 = scmp.eq.s32.totalorder %s24, 0
      %p114 = por %p112, %p113
      %s115 = ssub.s32 %s18, %s25
      %p116 = scmp.eq.s32.totalorder %s115, 0
      %s118 = sadd.s32 %s117, 1
      %s119 = scalar_select %p116, %s117, %s118
      %p122 = pneg %p116
      %p123 = scmp.eq.s32.totalorder %s18, 1
      %p124 = por %p122, %p123
      %p125 = scmp.ne.s32.totalorder %s117, %s120
      %p126 = scmp.eq.s32.totalorder %s18, 0
      %p127 = por %p125, %p126
      %p128 = scmp.ne.s32.totalorder %s117, %s120
      %p129 = scmp.eq.s32.totalorder %s23, 1
      %p130 = por %p128, %p129
      %p131 = scmp.ne.s32.totalorder %s120, %s121
      %p132 = scmp.eq.s32.totalorder %s23, 0
      %p133 = por %p131, %p132
      %p134 = scmp.ne.s32.totalorder %s120, %s121
      %p135 = scmp.eq.s32.totalorder %s24, 1
      %p136 = por %p134, %p135
      %p138 = scmp.ne.s32.totalorder %s121, %s137
      %p139 = scmp.eq.s32.totalorder %s24, 0
      %p140 = por %p138, %p139
      %p141 = scmp.le.s32.totalorder 1, %s18
      %p142 = scmp.lt.s32.totalorder %s18, 3
      %p143 = pnand %p141, %p142
      %p144 = pneg %p143
      // Predicated region
      $region9: #{tpu_custom_call.1} parent=5 // pred_check
        _
      $region10: #{tpu_custom_call.1} parent=5 // pred_check_branch
        %146 = sbr.rel (%p143) target = $region12
      $region11: #{tpu_custom_call.1} parent=5 // pred_region
        %s147 = ssub.s32 %s18, 1
        // Predicated region
        $region13: #{tpu_custom_call.1} parent=11 // pred_check
          %p148 = pneg %p39
        $region14: #{tpu_custom_call.1} parent=11 // pred_check_branch
          %150 = sbr.rel (%p148) target = $region16
        $region15: #{tpu_custom_call.1} parent=11 // pred_region
          %s152 = ssub.s32 16, 16
          %153 = vsyncadd [#allocation5], %s152
          %156 = dma.hbm_to_smem %s0, 16, [#allocation2], [#allocation5]
        $region16: #{tpu_custom_call.1} parent=11 // pred_fallthru
          _
        // Predicated region
        $region17: #{tpu_custom_call.1} parent=11 // pred_check
          %p157 = pneg %p86
        $region18: #{tpu_custom_call.1} parent=11 // pred_check_branch
          %159 = sbr.rel (%p157) target = $region20
        $region19: #{tpu_custom_call.1} parent=11 // pred_region
          %s161 = ssub.s32 2048, 2048
          %162 = vsyncadd [#allocation8], %s161
          %s163 = sshll.u32 [#allocation7], 4
          %s164 = int_to_ptr.vmem [resolvable:$true] %s163
          %169 = dma.hbm_to_vmem [thread:$0]  %s2, 2048, %s164, [#allocation8], 128, 128, 8
        $region20: #{tpu_custom_call.1} parent=11 // pred_fallthru
          _
        // Predicated region
        $region21: #{tpu_custom_call.1} parent=11 // pred_check
          %p170 = pneg %p107
        $region22: #{tpu_custom_call.1} parent=11 // pred_check_branch
          %172 = sbr.rel (%p170) target = $region24
        $region23: #{tpu_custom_call.1} parent=11 // pred_region
          _
        $region24: #{tpu_custom_call.1} parent=11 // pred_fallthru
          _
      $region12: #{tpu_custom_call.1} parent=5 // pred_fallthru
        _
      %p173 = scmp.lt.s32.totalorder %s18, 2
      // Predicated region
      $region25: #{tpu_custom_call.1} parent=5 // pred_check
        %p174 = pneg %p173
      $region26: #{tpu_custom_call.1} parent=5 // pred_check_branch
        %176 = sbr.rel (%p174) target = $region28
      $region27: #{tpu_custom_call.1} parent=5 // pred_region
        // Predicated region
        $region29: #{tpu_custom_call.1} parent=27 // pred_check
          %p177 = pneg %p59
        $region30: #{tpu_custom_call.1} parent=27 // pred_check_branch
          %179 = sbr.rel (%p177) target = $region32
        $region31: #{tpu_custom_call.1} parent=27 // pred_region
          %s180 = sand.u32 %s49, 1
          %s181 = scalar_lea.sflag [#allocation3], %s180
          %s182 = sand.u32 %s49, 1
          %s183 = smul.addr %s182, 256
          %s184 = scalar_lea.vmem [#allocation6], %s183
          %s185 = smul.u32 32, %s18
          %s187 = ssub.s32 4096, 4096
          %188 = vsyncadd %s181, %s187
          %s189 = smul.addr %s185, 128
          %s190 = scalar_lea.hbm %s1, %s189
          %s191 = sshll.u32 %s184, 4
          %s192 = int_to_ptr.vmem [resolvable:$true] %s191
          %197 = dma.hbm_to_vmem [thread:$0]  %s190, 4096, %s192, %s181, 128, 128, 8
        $region32: #{tpu_custom_call.1} parent=27 // pred_fallthru
          _
      $region28: #{tpu_custom_call.1} parent=5 // pred_fallthru
        _
      %p198 = scmp.le.s32.totalorder 1, %s18
      %p199 = scmp.lt.s32.totalorder %s18, 3
      %p200 = pnand %p198, %p199
      %p201 = pneg %p200
      // Predicated region
      $region33: #{tpu_custom_call.1} parent=5 // pred_check
        _
      $region34: #{tpu_custom_call.1} parent=5 // pred_check_branch
        %203 = sbr.rel (%p200) target = $region36
      $region35: #{tpu_custom_call.1} parent=5 // pred_region
        %s204 = ssub.s32 %s18, 1
        // Predicated region
        $region37: #{tpu_custom_call.1} parent=35 // pred_check
          %p205 = pneg %p39
        $region38: #{tpu_custom_call.1} parent=35 // pred_check_branch
          %207 = sbr.rel (%p205) target = $region40
        $region39: #{tpu_custom_call.1} parent=35 // pred_region
          %208 = dma.done [#allocation5], 16
        $region40: #{tpu_custom_call.1} parent=35 // pred_fallthru
          _
        %s209 = sand.u32 %s52, 1
        %s210 = scalar_lea.sflag [#allocation3], %s209
        %s211 = sand.u32 %s52, 1
        %s212 = smul.addr %s211, 256
        %s213 = scalar_lea.vmem [#allocation6], %s212
        // Predicated region
        $region41: #{tpu_custom_call.1} parent=35 // pred_check
          %p214 = pneg %p65
        $region42: #{tpu_custom_call.1} parent=35 // pred_check_branch
          %216 = sbr.rel (%p214) target = $region44
        $region43: #{tpu_custom_call.1} parent=35 // pred_region
          %217 = dma.done %s210, 4096
        $region44: #{tpu_custom_call.1} parent=35 // pred_fallthru
          _
        // Predicated region
        $region45: #{tpu_custom_call.1} parent=35 // pred_check
          %p218 = pneg %p86
        $region46: #{tpu_custom_call.1} parent=35 // pred_check_branch
          %220 = sbr.rel (%p218) target = $region48
        $region47: #{tpu_custom_call.1} parent=35 // pred_region
          %221 = dma.done [#allocation8], 2048
        $region48: #{tpu_custom_call.1} parent=35 // pred_fallthru
          _
        %222 = sfence
        %p223 = pneg %p39
        %p224 = pneg %p36
        %s225 = sand.u32 %s52, 1
        %s226 = scalar_lea.sflag [#allocation3], %s225
        %s227 = sand.u32 %s52, 1
        %s228 = smul.addr %s227, 256
        %s229 = scalar_lea.vmem [#allocation6], %s228
        %p230 = pneg %p65
        %p231 = pneg %p62
        %p232 = pneg %p86
        %p233 = pneg %p83
        %p234 = pneg %p107
        %p235 = pneg %p104
        %p236 = pneg %p133
        %p237 = pneg %p130
        %s238 = sand.u32 %s120, 1
        %s239 = scalar_lea.sflag [#allocation4], %s238
        %s240 = sand.u32 %s120, 1
        %s241 = smul.addr %s240, 256
        %s242 = scalar_lea.vmem [#allocation9], %s241
        %s243 = smul.u32 32, %s23
        %s244 = smul.u32 32, %s23
        %s245 = sld [smem:[#allocation2]]
        %s246 = sld [smem:[#allocation2 + $0x1]]
        %v247 = vld [vmem:[%s213] sm:$0xff]
        %v248 = vld [vmem:[%s213 + $0x8] sm:$0xff]
        %v249 = vld [vmem:[%s213 + $0x10] sm:$0xff]
        %v250 = vld [vmem:[%s213 + $0x18] sm:$0xff]
        %v251 = vld [vmem:[%s213 + $0x20] sm:$0xff]
        %v252 = vld [vmem:[%s213 + $0x28] sm:$0xff]
        %v253 = vld [vmem:[%s213 + $0x30] sm:$0xff]
        %v254 = vld [vmem:[%s213 + $0x38] sm:$0xff]
        %v255 = vld [vmem:[%s213 + $0x40] sm:$0xff]
        %v256 = vld [vmem:[%s213 + $0x48] sm:$0xff]
        %v257 = vld [vmem:[%s213 + $0x50] sm:$0xff]
        %v258 = vld [vmem:[%s213 + $0x58] sm:$0xff]
        %v259 = vld [vmem:[%s213 + $0x60] sm:$0xff]
        %v260 = vld [vmem:[%s213 + $0x68] sm:$0xff]
        %v261 = vld [vmem:[%s213 + $0x70] sm:$0xff]
        %v262 = vld [vmem:[%s213 + $0x78] sm:$0xff]
        %v263 = vld [vmem:[%s213 + $0x80] sm:$0xff]
        %v264 = vld [vmem:[%s213 + $0x88] sm:$0xff]
        %v265 = vld [vmem:[%s213 + $0x90] sm:$0xff]
        %v266 = vld [vmem:[%s213 + $0x98] sm:$0xff]
        %v267 = vld [vmem:[%s213 + $0xa0] sm:$0xff]
        %v268 = vld [vmem:[%s213 + $0xa8] sm:$0xff]
        %v269 = vld [vmem:[%s213 + $0xb0] sm:$0xff]
        %v270 = vld [vmem:[%s213 + $0xb8] sm:$0xff]
        %v271 = vld [vmem:[%s213 + $0xc0] sm:$0xff]
        %v272 = vld [vmem:[%s213 + $0xc8] sm:$0xff]
        %v273 = vld [vmem:[%s213 + $0xd0] sm:$0xff]
        %v274 = vld [vmem:[%s213 + $0xd8] sm:$0xff]
        %v275 = vld [vmem:[%s213 + $0xe0] sm:$0xff]
        %v276 = vld [vmem:[%s213 + $0xe8] sm:$0xff]
        %v277 = vld [vmem:[%s213 + $0xf0] sm:$0xff]
        %v278 = vld [vmem:[%s213 + $0xf8] sm:$0xff]
        %v279 = vld [vmem:[#allocation7] sm:$0xff]
        %v280 = vld [vmem:[#allocation7 + $0x8] sm:$0xff]
        %v281 = vld [vmem:[#allocation7 + $0x10] sm:$0xff]
        %v282 = vld [vmem:[#allocation7 + $0x18] sm:$0xff]
        %v283 = vld [vmem:[#allocation7 + $0x20] sm:$0xff]
        %v284 = vld [vmem:[#allocation7 + $0x28] sm:$0xff]
        %v285 = vld [vmem:[#allocation7 + $0x30] sm:$0xff]
        %v286 = vld [vmem:[#allocation7 + $0x38] sm:$0xff]
        %v287 = vld [vmem:[#allocation7 + $0x40] sm:$0xff]
        %v288 = vld [vmem:[#allocation7 + $0x48] sm:$0xff]
        %v289 = vld [vmem:[#allocation7 + $0x50] sm:$0xff]
        %v290 = vld [vmem:[#allocation7 + $0x58] sm:$0xff]
        %v291 = vld [vmem:[#allocation7 + $0x60] sm:$0xff]
        %v292 = vld [vmem:[#allocation7 + $0x68] sm:$0xff]
        %v293 = vld [vmem:[#allocation7 + $0x70] sm:$0xff]
        %v294 = vld [vmem:[#allocation7 + $0x78] sm:$0xff]
        %v295 = vld [vmem:[%s3] sm:$0x1]
        %v297 = vlaneseq
        %v298 = vshrl.u32 %v297, 7
        %v299 = vsub.s32 0, %v298
        %v300 = vrot.slane %v295, %v299
        %302 = vmatprep.subr.mxu0 0.0
        %303 = vmatpush1.msra.mxu0 %v279
        %304 = vmatprep.subr.mxu0 0.0
        %305 = vmatpush1.msra.mxu0 %v280
        %306 = vmatprep.subr.mxu0 0.0
        %307 = vmatpush1.msra.mxu0 %v281
        %308 = vmatprep.subr.mxu0 0.0
        %309 = vmatpush1.msra.mxu0 %v282
        %310 = vmatprep.subr.mxu0 0.0
        %311 = vmatpush1.msra.mxu0 %v283
        %312 = vmatprep.subr.mxu0 0.0
        %313 = vmatpush1.msra.mxu0 %v284
        %314 = vmatprep.subr.mxu0 0.0
        %315 = vmatpush1.msra.mxu0 %v285
        %316 = vmatprep.subr.mxu0 0.0
        %317 = vmatpush1.msra.mxu0 %v286
        %318 = vmatprep.subr.mxu0 0.0
        %319 = vmatpush1.msra.mxu0 %v287
        %320 = vmatprep.subr.mxu0 0.0
        %321 = vmatpush1.msra.mxu0 %v288
        %322 = vmatprep.subr.mxu0 0.0
        %323 = vmatpush1.msra.mxu0 %v289
        %324 = vmatprep.subr.mxu0 0.0
        %325 = vmatpush1.msra.mxu0 %v290
        %326 = vmatprep.subr.mxu0 0.0
        %327 = vmatpush1.msra.mxu0 %v291
        %328 = vmatprep.subr.mxu0 0.0
        %329 = vmatpush1.msra.mxu0 %v292
        %330 = vmatprep.subr.mxu0 0.0
        %331 = vmatpush1.msra.mxu0 %v293
        %332 = vmatprep.subr.mxu0 0.0
        %333 = vmatpush1.msra.mxu0 %v294
        %334 = vmatprep.subr.mxu0 0.0
        %335 = vmatpush1.msra.mxu0 0.0
        %336 = vmatprep.subr.mxu0 0.0
        %337 = vmatpush1.msra.mxu0 0.0
        %338 = vmatprep.subr.mxu0 0.0
        %339 = vmatpush1.msra.mxu0 0.0
        %340 = vmatprep.subr.mxu0 0.0
        %341 = vmatpush1.msra.mxu0 0.0
        %342 = vmatprep.subr.mxu0 0.0
        %343 = vmatpush1.msra.mxu0 0.0
        %344 = vmatprep.subr.mxu0 0.0
        %345 = vmatpush1.msra.mxu0 0.0
        %346 = vmatprep.subr.mxu0 0.0
        %347 = vmatpush1.msra.mxu0 0.0
        %348 = vmatprep.subr.mxu0 0.0
        %349 = vmatpush1.msra.mxu0 0.0
        %350 = vmatprep.subr.mxu0 0.0
        %351 = vmatpush1.msra.mxu0 0.0
        %352 = vmatprep.subr.mxu0 0.0
        %353 = vmatpush1.msra.mxu0 0.0
        %354 = vmatprep.subr.mxu0 0.0
        %355 = vmatpush1.msra.mxu0 0.0
        %356 = vmatprep.subr.mxu0 0.0
        %357 = vmatpush1.msra.mxu0 0.0
        %358 = vmatprep.subr.mxu0 0.0
        %359 = vmatpush1.msra.mxu0 0.0
        %360 = vmatprep.subr.mxu0 0.0
        %361 = vmatpush1.msra.mxu0 0.0
        %362 = vmatprep.subr.mxu0 0.0
        %363 = vmatpush1.msra.mxu0 0.0
        %364 = vmatprep.subr.mxu0 0.0
        %365 = vmatpush1.msra.mxu0 0.0
        %366 = vmatprep.mubr.f32.mxu0 0.0
        %367 = vmatmul.mubr.f32.gmra.mrb[0].mxu0 %v247
        %v368 = vpop.f32.mrb[0].mxu0
        %v369 = vadd.f32 %v300, %v368
        %v370 = vpop.f32.mrb[0].mxu0
        %371 = vmatprep.mubr.f32.mxu0 0.0
        %372 = vmatmul.mubr.f32.gmra.mrb[0].mxu0 %v248
        %v373 = vpop.f32.mrb[0].mxu0
        %v374 = vadd.f32 %v300, %v373
        %v375 = vpop.f32.mrb[0].mxu0
        %376 = vmatprep.mubr.f32.mxu0 0.0
        %377 = vmatmul.mubr.f32.gmra.mrb[0].mxu0 %v249
        %v378 = vpop.f32.mrb[0].mxu0
        %v379 = vadd.f32 %v300, %v378
        %v380 = vpop.f32.mrb[0].mxu0
        %381 = vmatprep.mubr.f32.mxu0 0.0
        %382 = vmatmul.mubr.f32.gmra.mrb[0].mxu0 %v250
        %v383 = vpop.f32.mrb[0].mxu0
        %v384 = vadd.f32 %v300, %v383
        %v385 = vpop.f32.mrb[0].mxu0
        %386 = vmatprep.mubr.f32.mxu0 0.0
        %387 = vmatmul.mubr.f32.gmra.mrb[0].mxu0 %v251
        %v388 = vpop.f32.mrb[0].mxu0
        %v389 = vadd.f32 %v300, %v388
        %v390 = vpop.f32.mrb[0].mxu0
        %391 = vmatprep.mubr.f32.mxu0 0.0
        %392 = vmatmul.mubr.f32.gmra.mrb[0].mxu0 %v252
        %v393 = vpop.f32.mrb[0].mxu0
        %v394 = vadd.f32 %v300, %v393
        %v395 = vpop.f32.mrb[0].mxu0
        %396 = vmatprep.mubr.f32.mxu0 0.0
        %397 = vmatmul.mubr.f32.gmra.mrb[0].mxu0 %v253
        %v398 = vpop.f32.mrb[0].mxu0
        %v399 = vadd.f32 %v300, %v398
        %v400 = vpop.f32.mrb[0].mxu0
        %401 = vmatprep.mubr.f32.mxu0 0.0
        %402 = vmatmul.mubr.f32.gmra.mrb[0].mxu0 %v254
        %v403 = vpop.f32.mrb[0].mxu0
        %v404 = vadd.f32 %v300, %v403
        %v405 = vpop.f32.mrb[0].mxu0
        %406 = vmatprep.mubr.f32.mxu0 0.0
        %407 = vmatmul.mubr.f32.gmra.mrb[0].mxu0 %v255
        %v408 = vpop.f32.mrb[0].mxu0
        %v409 = vadd.f32 %v300, %v408
        %v410 = vpop.f32.mrb[0].mxu0
        %411 = vmatprep.mubr.f32.mxu0 0.0
        %412 = vmatmul.mubr.f32.gmra.mrb[0].mxu0 %v256
        %v413 = vpop.f32.mrb[0].mxu0
        %v414 = vadd.f32 %v300, %v413
        %v415 = vpop.f32.mrb[0].mxu0
        %416 = vmatprep.mubr.f32.mxu0 0.0
        %417 = vmatmul.mubr.f32.gmra.mrb[0].mxu0 %v257
        %v418 = vpop.f32.mrb[0].mxu0
        %v419 = vadd.f32 %v300, %v418
        %v420 = vpop.f32.mrb[0].mxu0
        %421 = vmatprep.mubr.f32.mxu0 0.0
        %422 = vmatmul.mubr.f32.gmra.mrb[0].mxu0 %v258
        %v423 = vpop.f32.mrb[0].mxu0
        %v424 = vadd.f32 %v300, %v423
        %v425 = vpop.f32.mrb[0].mxu0
        %426 = vmatprep.mubr.f32.mxu0 0.0
        %427 = vmatmul.mubr.f32.gmra.mrb[0].mxu0 %v259
        %v428 = vpop.f32.mrb[0].mxu0
        %v429 = vadd.f32 %v300, %v428
        %v430 = vpop.f32.mrb[0].mxu0
        %431 = vmatprep.mubr.f32.mxu0 0.0
        %432 = vmatmul.mubr.f32.gmra.mrb[0].mxu0 %v260
        %v433 = vpop.f32.mrb[0].mxu0
        %v434 = vadd.f32 %v300, %v433
        %v435 = vpop.f32.mrb[0].mxu0
        %436 = vmatprep.mubr.f32.mxu0 0.0
        %437 = vmatmul.mubr.f32.gmra.mrb[0].mxu0 %v261
        %v438 = vpop.f32.mrb[0].mxu0
        %v439 = vadd.f32 %v300, %v438
        %v440 = vpop.f32.mrb[0].mxu0
        %441 = vmatprep.mubr.f32.mxu0 0.0
        %442 = vmatmul.mubr.f32.gmra.mrb[0].mxu0 %v262
        %v443 = vpop.f32.mrb[0].mxu0
        %v444 = vadd.f32 %v300, %v443
        %v445 = vpop.f32.mrb[0].mxu0
        %446 = vmatprep.mubr.f32.mxu0 0.0
        %447 = vmatmul.mubr.f32.gmra.mrb[0].mxu0 %v263
        %v448 = vpop.f32.mrb[0].mxu0
        %v449 = vadd.f32 %v300, %v448
        %v450 = vpop.f32.mrb[0].mxu0
        %451 = vmatprep.mubr.f32.mxu0 0.0
        %452 = vmatmul.mubr.f32.gmra.mrb[0].mxu0 %v264
        %v453 = vpop.f32.mrb[0].mxu0
        %v454 = vadd.f32 %v300, %v453
        %v455 = vpop.f32.mrb[0].mxu0
        %456 = vmatprep.mubr.f32.mxu0 0.0
        %457 = vmatmul.mubr.f32.gmra.mrb[0].mxu0 %v265
        %v458 = vpop.f32.mrb[0].mxu0
        %v459 = vadd.f32 %v300, %v458
        %v460 = vpop.f32.mrb[0].mxu0
        %461 = vmatprep.mubr.f32.mxu0 0.0
        %462 = vmatmul.mubr.f32.gmra.mrb[0].mxu0 %v266
        %v463 = vpop.f32.mrb[0].mxu0
        %v464 = vadd.f32 %v300, %v463
        %v465 = vpop.f32.mrb[0].mxu0
        %466 = vmatprep.mubr.f32.mxu0 0.0
        %467 = vmatmul.mubr.f32.gmra.mrb[0].mxu0 %v267
        %v468 = vpop.f32.mrb[0].mxu0
        %v469 = vadd.f32 %v300, %v468
        %v470 = vpop.f32.mrb[0].mxu0
        %471 = vmatprep.mubr.f32.mxu0 0.0
        %472 = vmatmul.mubr.f32.gmra.mrb[0].mxu0 %v268
        %v473 = vpop.f32.mrb[0].mxu0
        %v474 = vadd.f32 %v300, %v473
        %v475 = vpop.f32.mrb[0].mxu0
        %476 = vmatprep.mubr.f32.mxu0 0.0
        %477 = vmatmul.mubr.f32.gmra.mrb[0].mxu0 %v269
        %v478 = vpop.f32.mrb[0].mxu0
        %v479 = vadd.f32 %v300, %v478
        %v480 = vpop.f32.mrb[0].mxu0
        %481 = vmatprep.mubr.f32.mxu0 0.0
        %482 = vmatmul.mubr.f32.gmra.mrb[0].mxu0 %v270
        %v483 = vpop.f32.mrb[0].mxu0
        %v484 = vadd.f32 %v300, %v483
        %v485 = vpop.f32.mrb[0].mxu0
        %486 = vmatprep.mubr.f32.mxu0 0.0
        %487 = vmatmul.mubr.f32.gmra.mrb[0].mxu0 %v271
        %v488 = vpop.f32.mrb[0].mxu0
        %v489 = vadd.f32 %v300, %v488
        %v490 = vpop.f32.mrb[0].mxu0
        %491 = vmatprep.mubr.f32.mxu0 0.0
        %492 = vmatmul.mubr.f32.gmra.mrb[0].mxu0 %v272
        %v493 = vpop.f32.mrb[0].mxu0
        %v494 = vadd.f32 %v300, %v493
        %v495 = vpop.f32.mrb[0].mxu0
        %496 = vmatprep.mubr.f32.mxu0 0.0
        %497 = vmatmul.mubr.f32.gmra.mrb[0].mxu0 %v273
        %v498 = vpop.f32.mrb[0].mxu0
        %v499 = vadd.f32 %v300, %v498
        %v500 = vpop.f32.mrb[0].mxu0
        %501 = vmatprep.mubr.f32.mxu0 0.0
        %502 = vmatmul.mubr.f32.gmra.mrb[0].mxu0 %v274
        %v503 = vpop.f32.mrb[0].mxu0
        %v504 = vadd.f32 %v300, %v503
        %v505 = vpop.f32.mrb[0].mxu0
        %506 = vmatprep.mubr.f32.mxu0 0.0
        %507 = vmatmul.mubr.f32.gmra.mrb[0].mxu0 %v275
        %v508 = vpop.f32.mrb[0].mxu0
        %v509 = vadd.f32 %v300, %v508
        %v510 = vpop.f32.mrb[0].mxu0
        %511 = vmatprep.mubr.f32.mxu0 0.0
        %512 = vmatmul.mubr.f32.gmra.mrb[0].mxu0 %v276
        %v513 = vpop.f32.mrb[0].mxu0
        %v514 = vadd.f32 %v300, %v513
        %v515 = vpop.f32.mrb[0].mxu0
        %516 = vmatprep.mubr.f32.mxu0 0.0
        %517 = vmatmul.mubr.f32.gmra.mrb[0].mxu0 %v277
        %v518 = vpop.f32.mrb[0].mxu0
        %v519 = vadd.f32 %v300, %v518
        %v520 = vpop.f32.mrb[0].mxu0
        %521 = vmatprep.mubr.f32.mxu0 0.0
        %522 = vmatmul.mubr.f32.gmra.mrb[0].mxu0 %v278
        %v523 = vpop.f32.mrb[0].mxu0
        %v524 = vadd.f32 %v300, %v523
        %v525 = vpop.f32.mrb[0].mxu0
        %526 = vdwg.mxu0
        %v527 = vstv %s245
        %v528 = vrcp.pop %v527
        %v529 = vmul.f32 %v369, %v528
        %v530 = vmul.f32 %v374, %v528
        %v531 = vmul.f32 %v379, %v528
        %v532 = vmul.f32 %v384, %v528
        %v533 = vmul.f32 %v389, %v528
        %v534 = vmul.f32 %v394, %v528
        %v535 = vmul.f32 %v399, %v528
        %v536 = vmul.f32 %v404, %v528
        %v537 = vmul.f32 %v409, %v528
        %v538 = vmul.f32 %v414, %v528
        %v539 = vmul.f32 %v419, %v528
        %v540 = vmul.f32 %v424, %v528
        %v541 = vmul.f32 %v429, %v528
        %v542 = vmul.f32 %v434, %v528
        %v543 = vmul.f32 %v439, %v528
        %v544 = vmul.f32 %v444, %v528
        %v545 = vmul.f32 %v449, %v528
        %v546 = vmul.f32 %v454, %v528
        %v547 = vmul.f32 %v459, %v528
        %v548 = vmul.f32 %v464, %v528
        %v549 = vmul.f32 %v469, %v528
        %v550 = vmul.f32 %v474, %v528
        %v551 = vmul.f32 %v479, %v528
        %v552 = vmul.f32 %v484, %v528
        %v553 = vmul.f32 %v489, %v528
        %v554 = vmul.f32 %v494, %v528
        %v555 = vmul.f32 %v499, %v528
        %v556 = vmul.f32 %v504, %v528
        %v557 = vmul.f32 %v509, %v528
        %v558 = vmul.f32 %v514, %v528
        %v559 = vmul.f32 %v519, %v528
        %v560 = vmul.f32 %v524, %v528
        %v561 = vround.ne.pseudo %v529
        %v562 = vround.ne.pseudo %v530
        %v563 = vround.ne.pseudo %v531
        %v564 = vround.ne.pseudo %v532
        %v565 = vround.ne.pseudo %v533
        %v566 = vround.ne.pseudo %v534
        %v567 = vround.ne.pseudo %v535
        %v568 = vround.ne.pseudo %v536
        %v569 = vround.ne.pseudo %v537
        %v570 = vround.ne.pseudo %v538
        %v571 = vround.ne.pseudo %v539
        %v572 = vround.ne.pseudo %v540
        %v573 = vround.ne.pseudo %v541
        %v574 = vround.ne.pseudo %v542
        %v575 = vround.ne.pseudo %v543
        %v576 = vround.ne.pseudo %v544
        %v577 = vround.ne.pseudo %v545
        %v578 = vround.ne.pseudo %v546
        %v579 = vround.ne.pseudo %v547
        %v580 = vround.ne.pseudo %v548
        %v581 = vround.ne.pseudo %v549
        %v582 = vround.ne.pseudo %v550
        %v583 = vround.ne.pseudo %v551
        %v584 = vround.ne.pseudo %v552
        %v585 = vround.ne.pseudo %v553
        %v586 = vround.ne.pseudo %v554
        %v587 = vround.ne.pseudo %v555
        %v588 = vround.ne.pseudo %v556
        %v589 = vround.ne.pseudo %v557
        %v590 = vround.ne.pseudo %v558
        %v591 = vround.ne.pseudo %v559
        %v592 = vround.ne.pseudo %v560
        %v593 = vstv %s246
        %v594 = vadd.f32 %v561, %v593
        %v595 = vadd.f32 %v562, %v593
        %v596 = vadd.f32 %v563, %v593
        %v597 = vadd.f32 %v564, %v593
        %v598 = vadd.f32 %v565, %v593
        %v599 = vadd.f32 %v566, %v593
        %v600 = vadd.f32 %v567, %v593
        %v601 = vadd.f32 %v568, %v593
        %v602 = vadd.f32 %v569, %v593
        %v603 = vadd.f32 %v570, %v593
        %v604 = vadd.f32 %v571, %v593
        %v605 = vadd.f32 %v572, %v593
        %v606 = vadd.f32 %v573, %v593
        %v607 = vadd.f32 %v574, %v593
        %v608 = vadd.f32 %v575, %v593
        %v609 = vadd.f32 %v576, %v593
        %v610 = vadd.f32 %v577, %v593
        %v611 = vadd.f32 %v578, %v593
        %v612 = vadd.f32 %v579, %v593
        %v613 = vadd.f32 %v580, %v593
        %v614 = vadd.f32 %v581, %v593
        %v615 = vadd.f32 %v582, %v593
        %v616 = vadd.f32 %v583, %v593
        %v617 = vadd.f32 %v584, %v593
        %v618 = vadd.f32 %v585, %v593
        %v619 = vadd.f32 %v586, %v593
        %v620 = vadd.f32 %v587, %v593
        %v621 = vadd.f32 %v588, %v593
        %v622 = vadd.f32 %v589, %v593
        %v623 = vadd.f32 %v590, %v593
        %v624 = vadd.f32 %v591, %v593
        %v625 = vadd.f32 %v592, %v593
        %v626 = vmax.f32 %v594, 0.0
        %v627 = vmax.f32 %v595, 0.0
        %v628 = vmax.f32 %v596, 0.0
        %v629 = vmax.f32 %v597, 0.0
        %v630 = vmax.f32 %v598, 0.0
        %v631 = vmax.f32 %v599, 0.0
        %v632 = vmax.f32 %v600, 0.0
        %v633 = vmax.f32 %v601, 0.0
        %v634 = vmax.f32 %v602, 0.0
        %v635 = vmax.f32 %v603, 0.0
        %v636 = vmax.f32 %v604, 0.0
        %v637 = vmax.f32 %v605, 0.0
        %v638 = vmax.f32 %v606, 0.0
        %v639 = vmax.f32 %v607, 0.0
        %v640 = vmax.f32 %v608, 0.0
        %v641 = vmax.f32 %v609, 0.0
        %v642 = vmax.f32 %v610, 0.0
        %v643 = vmax.f32 %v611, 0.0
        %v644 = vmax.f32 %v612, 0.0
        %v645 = vmax.f32 %v613, 0.0
        %v646 = vmax.f32 %v614, 0.0
        %v647 = vmax.f32 %v615, 0.0
        %v648 = vmax.f32 %v616, 0.0
        %v649 = vmax.f32 %v617, 0.0
        %v650 = vmax.f32 %v618, 0.0
        %v651 = vmax.f32 %v619, 0.0
        %v652 = vmax.f32 %v620, 0.0
        %v653 = vmax.f32 %v621, 0.0
        %v654 = vmax.f32 %v622, 0.0
        %v655 = vmax.f32 %v623, 0.0
        %v656 = vmax.f32 %v624, 0.0
        %v657 = vmax.f32 %v625, 0.0
        %v658 = vmin.f32 %v626, 255.0
        %v659 = vmin.f32 %v627, 255.0
        %v660 = vmin.f32 %v628, 255.0
        %v661 = vmin.f32 %v629, 255.0
        %v662 = vmin.f32 %v630, 255.0
        %v663 = vmin.f32 %v631, 255.0
        %v664 = vmin.f32 %v632, 255.0
        %v665 = vmin.f32 %v633, 255.0
        %v666 = vmin.f32 %v634, 255.0
        %v667 = vmin.f32 %v635, 255.0
        %v668 = vmin.f32 %v636, 255.0
        %v669 = vmin.f32 %v637, 255.0
        %v670 = vmin.f32 %v638, 255.0
        %v671 = vmin.f32 %v639, 255.0
        %v672 = vmin.f32 %v640, 255.0
        %v673 = vmin.f32 %v641, 255.0
        %v674 = vmin.f32 %v642, 255.0
        %v675 = vmin.f32 %v643, 255.0
        %v676 = vmin.f32 %v644, 255.0
        %v677 = vmin.f32 %v645, 255.0
        %v678 = vmin.f32 %v646, 255.0
        %v679 = vmin.f32 %v647, 255.0
        %v680 = vmin.f32 %v648, 255.0
        %v681 = vmin.f32 %v649, 255.0
        %v682 = vmin.f32 %v650, 255.0
        %v683 = vmin.f32 %v651, 255.0
        %v684 = vmin.f32 %v652, 255.0
        %v685 = vmin.f32 %v653, 255.0
        %v686 = vmin.f32 %v654, 255.0
        %v687 = vmin.f32 %v655, 255.0
        %v688 = vmin.f32 %v656, 255.0
        %v689 = vmin.f32 %v657, 255.0
        %v690 = vsub.f32 %v658, %v593
        %v691 = vsub.f32 %v659, %v593
        %v692 = vsub.f32 %v660, %v593
        %v693 = vsub.f32 %v661, %v593
        %v694 = vsub.f32 %v662, %v593
        %v695 = vsub.f32 %v663, %v593
        %v696 = vsub.f32 %v664, %v593
        %v697 = vsub.f32 %v665, %v593
        %v698 = vsub.f32 %v666, %v593
        %v699 = vsub.f32 %v667, %v593
        %v700 = vsub.f32 %v668, %v593
        %v701 = vsub.f32 %v669, %v593
        %v702 = vsub.f32 %v670, %v593
        %v703 = vsub.f32 %v671, %v593
        %v704 = vsub.f32 %v672, %v593
        %v705 = vsub.f32 %v673, %v593
        %v706 = vsub.f32 %v674, %v593
        %v707 = vsub.f32 %v675, %v593
        %v708 = vsub.f32 %v676, %v593
        %v709 = vsub.f32 %v677, %v593
        %v710 = vsub.f32 %v678, %v593
        %v711 = vsub.f32 %v679, %v593
        %v712 = vsub.f32 %v680, %v593
        %v713 = vsub.f32 %v681, %v593
        %v714 = vsub.f32 %v682, %v593
        %v715 = vsub.f32 %v683, %v593
        %v716 = vsub.f32 %v684, %v593
        %v717 = vsub.f32 %v685, %v593
        %v718 = vsub.f32 %v686, %v593
        %v719 = vsub.f32 %v687, %v593
        %v720 = vsub.f32 %v688, %v593
        %v721 = vsub.f32 %v689, %v593
        %v722 = vmul.f32 %v690, %v527
        %v723 = vmul.f32 %v691, %v527
        %v724 = vmul.f32 %v692, %v527
        %v725 = vmul.f32 %v693, %v527
        %v726 = vmul.f32 %v694, %v527
        %v727 = vmul.f32 %v695, %v527
        %v728 = vmul.f32 %v696, %v527
        %v729 = vmul.f32 %v697, %v527
        %v730 = vmul.f32 %v698, %v527
        %v731 = vmul.f32 %v699, %v527
        %v732 = vmul.f32 %v700, %v527
        %v733 = vmul.f32 %v701, %v527
        %v734 = vmul.f32 %v702, %v527
        %v735 = vmul.f32 %v703, %v527
        %v736 = vmul.f32 %v704, %v527
        %v737 = vmul.f32 %v705, %v527
        %v738 = vmul.f32 %v706, %v527
        %v739 = vmul.f32 %v707, %v527
        %v740 = vmul.f32 %v708, %v527
        %v741 = vmul.f32 %v709, %v527
        %v742 = vmul.f32 %v710, %v527
        %v743 = vmul.f32 %v711, %v527
        %v744 = vmul.f32 %v712, %v527
        %v745 = vmul.f32 %v713, %v527
        %v746 = vmul.f32 %v714, %v527
        %v747 = vmul.f32 %v715, %v527
        %v748 = vmul.f32 %v716, %v527
        %v749 = vmul.f32 %v717, %v527
        %v750 = vmul.f32 %v718, %v527
        %v751 = vmul.f32 %v719, %v527
        %v752 = vmul.f32 %v720, %v527
        %v753 = vmul.f32 %v721, %v527
        %754 = vst [vmem:[%s242] sm:$0xff] %v722
        %755 = vst [vmem:[%s242 + $0x8] sm:$0xff] %v723
        %756 = vst [vmem:[%s242 + $0x10] sm:$0xff] %v724
        %757 = vst [vmem:[%s242 + $0x18] sm:$0xff] %v725
        %758 = vst [vmem:[%s242 + $0x20] sm:$0xff] %v726
        %759 = vst [vmem:[%s242 + $0x28] sm:$0xff] %v727
        %760 = vst [vmem:[%s242 + $0x30] sm:$0xff] %v728
        %761 = vst [vmem:[%s242 + $0x38] sm:$0xff] %v729
        %762 = vst [vmem:[%s242 + $0x40] sm:$0xff] %v730
        %763 = vst [vmem:[%s242 + $0x48] sm:$0xff] %v731
        %764 = vst [vmem:[%s242 + $0x50] sm:$0xff] %v732
        %765 = vst [vmem:[%s242 + $0x58] sm:$0xff] %v733
        %766 = vst [vmem:[%s242 + $0x60] sm:$0xff] %v734
        %767 = vst [vmem:[%s242 + $0x68] sm:$0xff] %v735
        %768 = vst [vmem:[%s242 + $0x70] sm:$0xff] %v736
        %769 = vst [vmem:[%s242 + $0x78] sm:$0xff] %v737
        %770 = vst [vmem:[%s242 + $0x80] sm:$0xff] %v738
        %771 = vst [vmem:[%s242 + $0x88] sm:$0xff] %v739
        %772 = vst [vmem:[%s242 + $0x90] sm:$0xff] %v740
        %773 = vst [vmem:[%s242 + $0x98] sm:$0xff] %v741
        %774 = vst [vmem:[%s242 + $0xa0] sm:$0xff] %v742
        %775 = vst [vmem:[%s242 + $0xa8] sm:$0xff] %v743
        %776 = vst [vmem:[%s242 + $0xb0] sm:$0xff] %v744
        %777 = vst [vmem:[%s242 + $0xb8] sm:$0xff] %v745
        %778 = vst [vmem:[%s242 + $0xc0] sm:$0xff] %v746
        %779 = vst [vmem:[%s242 + $0xc8] sm:$0xff] %v747
        %780 = vst [vmem:[%s242 + $0xd0] sm:$0xff] %v748
        %781 = vst [vmem:[%s242 + $0xd8] sm:$0xff] %v749
        %782 = vst [vmem:[%s242 + $0xe0] sm:$0xff] %v750
        %783 = vst [vmem:[%s242 + $0xe8] sm:$0xff] %v751
        %784 = vst [vmem:[%s242 + $0xf0] sm:$0xff] %v752
        %785 = vst [vmem:[%s242 + $0xf8] sm:$0xff] %v753
        %s786 = sand.u32 %s120, 1
        %s787 = scalar_lea.sflag [#allocation4], %s786
        %s788 = sand.u32 %s120, 1
        %s789 = smul.addr %s788, 256
        %s790 = scalar_lea.vmem [#allocation9], %s789
        // Predicated region
        $region49: #{tpu_custom_call.1} parent=35 // pred_check
          %p791 = pneg %p130
        $region50: #{tpu_custom_call.1} parent=35 // pred_check_branch
          %793 = sbr.rel (%p791) target = $region52
        $region51: #{tpu_custom_call.1} parent=35 // pred_region
          %s794 = smul.u32 32, %s23
          %s796 = ssub.s32 4096, 4096
          %797 = vsyncadd %s787, %s796
          %s798 = smul.addr %s794, 128
          %s799 = scalar_lea.hbm %s4, %s798
          %s800 = sshll.u32 %s790, 4
          %s801 = int_to_ptr.vmem [resolvable:$true] %s800
          %806 = dma.vmem_to_hbm [thread:$0]  %s801, 4096, %s799, %s787, 128, 128, 8
        $region52: #{tpu_custom_call.1} parent=35 // pred_fallthru
          _
      $region36: #{tpu_custom_call.1} parent=5 // pred_fallthru
        _
      %p807 = scmp.le.s32.totalorder 2, %s18
      // Predicated region
      $region53: #{tpu_custom_call.1} parent=5 // pred_check
        %p808 = pneg %p807
      $region54: #{tpu_custom_call.1} parent=5 // pred_check_branch
        %810 = sbr.rel (%p808) target = $region56
      $region55: #{tpu_custom_call.1} parent=5 // pred_region
        %s811 = ssub.s32 %s18, 2
        // Predicated region
        $region57: #{tpu_custom_call.1} parent=55 // pred_check
          %p812 = pneg %p136
        $region58: #{tpu_custom_call.1} parent=55 // pred_check_branch
          %814 = sbr.rel (%p812) target = $region60
        $region59: #{tpu_custom_call.1} parent=55 // pred_region
          %s815 = sand.u32 %s121, 1
          %s816 = scalar_lea.sflag [#allocation4], %s815
          %s817 = sand.u32 %s121, 1
          %s818 = smul.addr %s817, 256
          %s819 = scalar_lea.vmem [#allocation9], %s818
          %820 = dma.done %s816, 4096
        $region60: #{tpu_custom_call.1} parent=55 // pred_fallthru
          _
      $region56: #{tpu_custom_call.1} parent=5 // pred_fallthru
        _
    $region6: #{tpu_custom_call.1} parent=1 // loop_footer
      %s22 = sadd.s32 1, %s18
    $region7: #{tpu_custom_call.1} parent=1 // loop_footer_branch
      %17 = sbr.rel target = $region3
    $region8: #{tpu_custom_call.1} parent=1 // loop_exit
      _
    %821 = vsyncpa [#allocation3], 1
    %s822 = scalar_lea.sflag [#allocation3], 1
    %823 = vsyncpa %s822, 1
    %824 = vsyncpa [#allocation8], 1
    %825 = vsyncpa [#allocation4], 1
    %s826 = scalar_lea.sflag [#allocation4], 1
    %827 = vsyncpa %s826, 1
    %828 = vsyncpa [#allocation5], 1
    %s829 = scalar_lea.sflag [#allocation5], 1
    %830 = vsyncpa %s829, 1

</llo_original>
